<compile_context>
chip_gen: v7x
topology: tpu7x:2x2x1
jax: 0.10.0
libtpu: 0.0.40
codegen_flags: <defaults>
</compile_context>

<pallas_src>
import functools

import jax
import jax.numpy as jnp
from jax import lax
from jax.experimental import pallas as pl
from jax.experimental.pallas import tpu as pltpu


def lstm_kernel(xw_ref, wh_ref, h0_ref, c0_ref,
                out_ref, hfin_ref, cfin_ref,
                h_sc, c_sc,
                *, t_blk, batch, hidden, h_pad):
    blk = pl.program_id(0)

    # Initial hidden / memory-cell state (zeros when H_C is None).
    @pl.when(blk == 0)
    def _():
        h_sc[...] = h0_ref[...]
        c_sc[...] = c0_ref[...]

    wh = wh_ref[...]                 # (H, 4H) resident recurrent weights
    h3 = 3 * hidden

    # Zero-padding used to keep the per-step store lane-dense; hoisted out of
    # the loop so the broadcast is materialized once per block, not per step.
    if h_pad > hidden:
        pad_zeros = jnp.zeros((batch, h_pad - hidden), jnp.float32)

    def step(t, carry):
        h, c = carry
        row = pl.multiple_of(t * batch, batch)   # sublane-aligned offset hint
        # z = (x_t @ Wx + b) + h @ Wh, packed over the 4 gates -> (B, 4H).
        # Only the recurrent matmul stays on the serial critical path.
        z = xw_ref[pl.ds(row, batch), :] + jnp.dot(
            h.astype(wh.dtype), wh, preferred_element_type=jnp.float32)
        gates = jax.nn.sigmoid(z[:, :h3])        # fused sigmoid over [i|f|o]
        c_tilde = jnp.tanh(z[:, h3:])            # candidate cell
        i_g = gates[:, :hidden]
        f_g = gates[:, hidden:2 * hidden]
        o_g = gates[:, 2 * hidden:h3]
        c_new = f_g * c + i_g * c_tilde          # elementwise math stays f32
        h_new = jnp.tanh(c_new) * o_g
        # Lane-dense (B, h_pad) store (off the critical path).
        if h_pad > hidden:
            h_store = jnp.concatenate([h_new, pad_zeros], axis=-1)
        else:
            h_store = h_new
        out_ref[pl.ds(row, batch), :] = h_store
        return h_new, c_new

    h_last, c_last = lax.fori_loop(0, t_blk, step, (h_sc[...], c_sc[...]),
                                   unroll=min(t_blk, 8))   # partial unroll

    # Carry state to the next block of timesteps (grid axis is sequential).
    h_sc[...] = h_last
    c_sc[...] = c_last

    # Final (H, C): only the very last step matters.
    @pl.when(blk == pl.num_programs(0) - 1)
    def _():
        hfin_ref[...] = h_last
        cfin_ref[...] = c_last


def lstm_forward(inputs, wx_packed, wh_packed, b_packed, H_C=None, *,
                 t_blk=None, mxu_dtype=jnp.float32):
    """inputs: (T, B, E); wx_packed: (E, 4H); wh_packed: (H, 4H);
    b_packed: (1, 4H).  Gate packing order along the last dim is [i, f, o, c].
    Returns (outputs (T, B, H), (H_final, C_final))."""
    T, B, E = inputs.shape
    H = wx_packed.shape[-1] // 4
    H_pad = pl.cdiv(H, 128) * 128        # lane-dense output width (>= 128)

    if t_blk is None:
        # Amortize the ~0.35us per-grid-step overhead over many timesteps;
        # the streamed blocks below stay well inside a v7x-safe VMEM budget.
        cap = 64
        t_blk = T if T <= cap else max(d for d in range(1, cap + 1) if T % d == 0)
    assert T % t_blk == 0, "t_blk must divide num_steps"
    n_blk = T // t_blk
    rows_blk = t_blk * B

    if H_C is None:
        h0 = jnp.zeros((B, H), jnp.float32)
        c0 = jnp.zeros((B, H), jnp.float32)
    else:
        h0, c0 = H_C
        h0 = h0.astype(jnp.float32)
        c0 = c0.astype(jnp.float32)

    # Hoisted input projection: one big (T*B, E) x (E, 4H) matmul in XLA at
    # full MXU tile sizes; the result is streamed into the kernel block-by-
    # block (lane width 4H), and the BlockSpec pipeline hides its DMA behind
    # the serial recurrence.
    x2d = inputs.reshape(T * B, E)
    xw = (jnp.dot(x2d.astype(mxu_dtype), wx_packed.astype(mxu_dtype),
                  preferred_element_type=jnp.float32)
          + b_packed.astype(jnp.float32))          # (T*B, 4H), f32
    wh = wh_packed.astype(mxu_dtype)               # (H, 4H) MXU operand

    # Explicit VMEM budget (v7x only has 64 MiB physical / 32 MiB scoped
    # default): streamed xw and out blocks are double-buffered.
    mxu_isz = jnp.finfo(mxu_dtype).bits // 8
    need = (2 * rows_blk * 4 * H * 4        # XW blocks (f32, double-buffered)
            + 2 * rows_blk * H_pad * 4      # out slab (double-buffered)
            + H * 4 * H * mxu_isz           # resident Wh
            + 8 * B * H_pad * 4)            # small residents / carries (padded)
    vmem_limit = int(min(max(2 * need, 16 * 2**20), 64 * 2**20))

    kernel = functools.partial(lstm_kernel, t_blk=t_blk, batch=B, hidden=H,
                               h_pad=H_pad)
    vmem = pltpu.MemorySpace.VMEM

    grid_spec = pltpu.PrefetchScalarGridSpec(
        num_scalar_prefetch=0,
        grid=(n_blk,),
        in_specs=[
            pl.BlockSpec((rows_blk, 4 * H), lambda i: (i, 0)),  # XW block
            pl.BlockSpec(memory_space=vmem),                    # Wh (resident)
            pl.BlockSpec(memory_space=vmem),                    # initial H
            pl.BlockSpec(memory_space=vmem),                    # initial C
        ],
        out_specs=[
            pl.BlockSpec((rows_blk, H_pad), lambda i: (i, 0)),  # padded H slab
            pl.BlockSpec((B, H), lambda i: (0, 0)),             # final H
            pl.BlockSpec((B, H), lambda i: (0, 0)),             # final C
        ],
        scratch_shapes=[
            pltpu.VMEM((B, H), jnp.float32),                    # H carry
            pltpu.VMEM((B, H), jnp.float32),                    # C carry
        ],
    )

    out2d, h_fin, c_fin = pl.pallas_call(
        kernel,
        grid_spec=grid_spec,
        out_shape=[
            jax.ShapeDtypeStruct((T * B, H_pad), jnp.float32),
            jax.ShapeDtypeStruct((B, H), jnp.float32),
            jax.ShapeDtypeStruct((B, H), jnp.float32),
        ],
        compiler_params=pltpu.CompilerParams(
            # The grid axis carries the h/c recurrence in VMEM scratch: it
            # MUST stay "arbitrary" (sequential).  Marking it "parallel" (or
            # core_parallel on v7x) would silently break the recurrence.
            dimension_semantics=("arbitrary",),
            vmem_limit_bytes=vmem_limit),
    )(xw, wh, h0, c0)

    outputs = out2d[:, :H].reshape(T, B, H)
    return outputs, (h_fin, c_fin)


def lstm_reference(inputs, gate_params):
    """Pure-JAX reference matching the PyTorch module semantics (per-gate)."""
    T, B, E = inputs.shape
    (W_xi, W_hi, b_i), (W_xf, W_hf, b_f), (W_xo, W_ho, b_o), (W_xc, W_hc, b_c) = gate_params
    H = W_xi.shape[-1]
    h = jnp.zeros((B, H), jnp.float32)
    c = jnp.zeros((B, H), jnp.float32)
    outs = []
    for t in range(T):
        x = inputs[t]
        I = jax.nn.sigmoid(x @ W_xi + h @ W_hi + b_i)
        F = jax.nn.sigmoid(x @ W_xf + h @ W_hf + b_f)
        O = jax.nn.sigmoid(x @ W_xo + h @ W_ho + b_o)
        Ct = jnp.tanh(x @ W_xc + h @ W_hc + b_c)
        c = F * c + I * Ct
        h = jnp.tanh(c) * O
        outs.append(h)
    return jnp.stack(outs), (h, c)


if __name__ == "__main__":
    # Small shapes consistent with the module's forward:
    #   inputs: [num_steps, batch_size, embedding_size]; hidden = 32 -> 4H = 128.
    T, B, E, H = 8, 8, 16, 32
    sigma = 0.01

    key = jax.random.PRNGKey(0)
    k = jax.random.split(key, 9)

    inputs = jax.random.normal(k[0], (T, B, E), dtype=jnp.float32)

    def triple(kx, kh):
        # "randn * sigma" weight init, zero bias (same as the module).
        return (jax.random.normal(kx, (E, H), dtype=jnp.float32) * sigma,
                jax.random.normal(kh, (H, H), dtype=jnp.float32) * sigma,
                jnp.zeros((H,), dtype=jnp.float32))

    g_i = triple(k[1], k[2])
    g_f = triple(k[3], k[4])
    g_o = triple(k[5], k[6])
    g_c = triple(k[7], k[8])

    # Pack gates along the lane dim in order [i, f, o, c] -> lane-dense 4H.
    # NOTE: this from-scratch module defines its own packing; if weights were
    # ever imported from torch.nn.LSTM ([i, f, g, o], separate b_ih/b_hh),
    # they must be permuted and the two biases summed.
    wx_p = jnp.concatenate([g_i[0], g_f[0], g_o[0], g_c[0]], axis=1)   # (E, 4H)
    wh_p = jnp.concatenate([g_i[1], g_f[1], g_o[1], g_c[1]], axis=1)   # (H, 4H)
    b_p = jnp.concatenate([g_i[2], g_f[2], g_o[2], g_c[2]])[None, :]   # (1, 4H)

    ref_outs, (ref_h, ref_c) = lstm_reference(inputs, (g_i, g_f, g_o, g_c))

    # f32 MXU operands: multi-block (grid=(2,), carries state across grid
    # steps) and single-block configurations.
    for t_blk in (4, 8):
        outs, (h_fin, c_fin) = lstm_forward(inputs, wx_p, wh_p, b_p, t_blk=t_blk)
        jax.block_until_ready((outs, h_fin, c_fin))
        assert jnp.allclose(outs, ref_outs, atol=1e-5, rtol=1e-5)
        assert jnp.allclose(h_fin, ref_h, atol=1e-5, rtol=1e-5)
        assert jnp.allclose(c_fin, ref_c, atol=1e-5, rtol=1e-5)

    # bf16 MXU operands (v6e/v7x fast path); gate elementwise math stays f32.
    outs, (h_fin, c_fin) = lstm_forward(inputs, wx_p, wh_p, b_p,
                                        mxu_dtype=jnp.bfloat16)
    jax.block_until_ready((outs, h_fin, c_fin))
    assert jnp.allclose(outs, ref_outs, atol=5e-3, rtol=1e-2)
    assert jnp.allclose(h_fin, ref_h, atol=5e-3, rtol=1e-2)
    assert jnp.allclose(c_fin, ref_c, atol=5e-3, rtol=1e-2)

    print("KERNEL_OK")
</pallas_src>

<mosaic_0001>
module attributes {stable_mosaic.version = 11 : i64} {
  func.func @lstm_kernel(%arg0: i32, %arg1: memref<32x128xf32, #tpu.memory_space<vmem>>, %arg2: memref<32x128xf32, #tpu.memory_space<vmem>>, %arg3: memref<8x32xf32, #tpu.memory_space<vmem>>, %arg4: memref<8x32xf32, #tpu.memory_space<vmem>>, %arg5: memref<32x128xf32, #tpu.memory_space<vmem>>, %arg6: memref<8x32xf32, #tpu.memory_space<vmem>>, %arg7: memref<8x32xf32, #tpu.memory_space<vmem>>, %arg8: memref<8x32xf32, #tpu.memory_space<vmem>>, %arg9: memref<8x32xf32, #tpu.memory_space<vmem>>) attributes {dimension_semantics = [#tpu.dimension_semantics<arbitrary>], iteration_bounds = array<i64: 2>, scalar_prefetch = 0 : i64, scratch_operands = 2 : i64, tpu.core_type = #tpu.core_type<tc>, window_params = [{transform_indices = @transform_0, window_bounds = array<i64: 32, 128>}, {pipeline_mode = #tpu.pipeline_mode<synchronous>, transform_indices = @transform_1, window_bounds = array<i64: 32, 128>}, {pipeline_mode = #tpu.pipeline_mode<synchronous>, transform_indices = @transform_2, window_bounds = array<i64: 8, 32>}, {pipeline_mode = #tpu.pipeline_mode<synchronous>, transform_indices = @transform_3, window_bounds = array<i64: 8, 32>}, {transform_indices = @transform_4, window_bounds = array<i64: 32, 128>}, {pipeline_mode = #tpu.pipeline_mode<synchronous>, transform_indices = @transform_5, window_bounds = array<i64: 8, 32>}, {pipeline_mode = #tpu.pipeline_mode<synchronous>, transform_indices = @transform_6, window_bounds = array<i64: 8, 32>}]} {
    %c0_i32 = arith.constant 0 : i32
    %0 = arith.cmpi eq, %arg0, %c0_i32 : i32
    %1 = arith.extui %0 : i1 to i32
    %c0_i32_0 = arith.constant 0 : i32
    %2 = arith.cmpi ne, %1, %c0_i32_0 : i32
    scf.if %2 {
      %c0_32 = arith.constant 0 : index
      %c0_33 = arith.constant 0 : index
      %112 = vector.load %arg3[%c0_32, %c0_33] : memref<8x32xf32, #tpu.memory_space<vmem>>, vector<8x32xf32>
      %c0_34 = arith.constant 0 : index
      %c0_35 = arith.constant 0 : index
      %113 = vector.load %arg8[%c0_34, %c0_35] : memref<8x32xf32, #tpu.memory_space<vmem>>, vector<8x32xf32>
      tpu.vector_store %arg8[%c0_34, %c0_35], %112 {strides = array<i32>} : memref<8x32xf32, #tpu.memory_space<vmem>>, vector<8x32xf32>,
      %c0_36 = arith.constant 0 : index
      %c0_37 = arith.constant 0 : index
      %114 = vector.load %arg4[%c0_36, %c0_37] : memref<8x32xf32, #tpu.memory_space<vmem>>, vector<8x32xf32>
      %c0_38 = arith.constant 0 : index
      %c0_39 = arith.constant 0 : index
      %115 = vector.load %arg9[%c0_38, %c0_39] : memref<8x32xf32, #tpu.memory_space<vmem>>, vector<8x32xf32>
      tpu.vector_store %arg9[%c0_38, %c0_39], %114 {strides = array<i32>} : memref<8x32xf32, #tpu.memory_space<vmem>>, vector<8x32xf32>,
    } else {
    }
    %c0 = arith.constant 0 : index
    %c0_1 = arith.constant 0 : index
    %3 = vector.load %arg2[%c0, %c0_1] : memref<32x128xf32, #tpu.memory_space<vmem>>, vector<32x128xf32>
    %cst = arith.constant 0.000000e+00 : f32
    %4 = vector.broadcast %cst : f32 to vector<8x96xf32>
    %c0_2 = arith.constant 0 : index
    %c0_3 = arith.constant 0 : index
    %5 = vector.load %arg8[%c0_2, %c0_3] : memref<8x32xf32, #tpu.memory_space<vmem>>, vector<8x32xf32>
    %c0_4 = arith.constant 0 : index
    %c0_5 = arith.constant 0 : index
    %6 = vector.load %arg9[%c0_4, %c0_5] : memref<8x32xf32, #tpu.memory_space<vmem>>, vector<8x32xf32>
    %c0_i32_6 = arith.constant 0 : i32
    %c8_i32 = arith.constant 8 : i32
    %7 = arith.muli %c0_i32_6, %c8_i32 : i32
    %8 = tpu.assume_multiple %7, 8 : i32
    %9 = arith.index_cast %8 : i32 to index
    %c0_7 = arith.constant 0 : index
    %10 = vector.load %arg1[%9, %c0_7] : memref<32x128xf32, #tpu.memory_space<vmem>>, vector<8x128xf32>
    %cst_8 = arith.constant dense<0.000000e+00> : vector<8x128xf32>
    %11 = tpu.matmul %5, %3, %cst_8 {dimension_numbers = #tpu.dot_dimension_numbers<[1], [0], [0], [1], [0, 0, 1, 1], [], []>} : vector<8x32xf32>, vector<32x128xf32>, vector<8x128xf32> -> vector<8x128xf32>
    %12 = arith.addf %10, %11 : vector<8x128xf32>
    %13 = vector.extract_strided_slice %12 {offsets = [0, 0], sizes = [8, 96], strides = [1, 1]} : vector<8x128xf32> to vector<8x96xf32>
    %14 = arith.negf %13 : vector<8x96xf32>
    %15 = math.exp %14 : vector<8x96xf32>
    %cst_9 = arith.constant 1.000000e+00 : f32
    %16 = vector.broadcast %cst_9 : f32 to vector<8x96xf32>
    %17 = arith.addf %16, %15 : vector<8x96xf32>
    %18 = arith.divf %16, %17 : vector<8x96xf32>
    %19 = vector.extract_strided_slice %12 {offsets = [0, 96], sizes = [8, 32], strides = [1, 1]} : vector<8x128xf32> to vector<8x32xf32>
    %20 = math.tanh %19 : vector<8x32xf32>
    %21 = vector.extract_strided_slice %18 {offsets = [0, 0], sizes = [8, 32], strides = [1, 1]} : vector<8x96xf32> to vector<8x32xf32>
    %22 = vector.extract_strided_slice %18 {offsets = [0, 32], sizes = [8, 32], strides = [1, 1]} : vector<8x96xf32> to vector<8x32xf32>
    %23 = vector.extract_strided_slice %18 {offsets = [0, 64], sizes = [8, 32], strides = [1, 1]} : vector<8x96xf32> to vector<8x32xf32>
    %24 = arith.mulf %22, %6 : vector<8x32xf32>
    %25 = arith.mulf %21, %20 : vector<8x32xf32>
    %26 = arith.addf %24, %25 : vector<8x32xf32>
    %27 = math.tanh %26 : vector<8x32xf32>
    %28 = arith.mulf %27, %23 : vector<8x32xf32>
    %29 = tpu.concatenate %28, %4 in 1 : vector<8x32xf32>, vector<8x96xf32> -> vector<8x128xf32>
    %30 = arith.index_cast %8 : i32 to index
    %c0_10 = arith.constant 0 : index
    %31 = vector.load %arg5[%30, %c0_10] : memref<32x128xf32, #tpu.memory_space<vmem>>, vector<8x128xf32>
    tpu.vector_store %arg5[%30, %c0_10], %29 {strides = array<i32>} : memref<32x128xf32, #tpu.memory_space<vmem>>, vector<8x128xf32>,
    %c1_i32 = arith.constant 1 : i32
    %c8_i32_11 = arith.constant 8 : i32
    %32 = arith.muli %c1_i32, %c8_i32_11 : i32
    %33 = tpu.assume_multiple %32, 8 : i32
    %34 = arith.index_cast %33 : i32 to index
    %c0_12 = arith.constant 0 : index
    %35 = vector.load %arg1[%34, %c0_12] : memref<32x128xf32, #tpu.memory_space<vmem>>, vector<8x128xf32>
    %cst_13 = arith.constant dense<0.000000e+00> : vector<8x128xf32>
    %36 = tpu.matmul %28, %3, %cst_13 {dimension_numbers = #tpu.dot_dimension_numbers<[1], [0], [0], [1], [0, 0, 1, 1], [], []>} : vector<8x32xf32>, vector<32x128xf32>, vector<8x128xf32> -> vector<8x128xf32>
    %37 = arith.addf %35, %36 : vector<8x128xf32>
    %38 = vector.extract_strided_slice %37 {offsets = [0, 0], sizes = [8, 96], strides = [1, 1]} : vector<8x128xf32> to vector<8x96xf32>
    %39 = arith.negf %38 : vector<8x96xf32>
    %40 = math.exp %39 : vector<8x96xf32>
    %cst_14 = arith.constant 1.000000e+00 : f32
    %41 = vector.broadcast %cst_14 : f32 to vector<8x96xf32>
    %42 = arith.addf %41, %40 : vector<8x96xf32>
    %43 = arith.divf %41, %42 : vector<8x96xf32>
    %44 = vector.extract_strided_slice %37 {offsets = [0, 96], sizes = [8, 32], strides = [1, 1]} : vector<8x128xf32> to vector<8x32xf32>
    %45 = math.tanh %44 : vector<8x32xf32>
    %46 = vector.extract_strided_slice %43 {offsets = [0, 0], sizes = [8, 32], strides = [1, 1]} : vector<8x96xf32> to vector<8x32xf32>
    %47 = vector.extract_strided_slice %43 {offsets = [0, 32], sizes = [8, 32], strides = [1, 1]} : vector<8x96xf32> to vector<8x32xf32>
    %48 = vector.extract_strided_slice %43 {offsets = [0, 64], sizes = [8, 32], strides = [1, 1]} : vector<8x96xf32> to vector<8x32xf32>
    %49 = arith.mulf %47, %26 : vector<8x32xf32>
    %50 = arith.mulf %46, %45 : vector<8x32xf32>
    %51 = arith.addf %49, %50 : vector<8x32xf32>
    %52 = math.tanh %51 : vector<8x32xf32>
    %53 = arith.mulf %52, %48 : vector<8x32xf32>
    %54 = tpu.concatenate %53, %4 in 1 : vector<8x32xf32>, vector<8x96xf32> -> vector<8x128xf32>
    %55 = arith.index_cast %33 : i32 to index
    %c0_15 = arith.constant 0 : index
    %56 = vector.load %arg5[%55, %c0_15] : memref<32x128xf32, #tpu.memory_space<vmem>>, vector<8x128xf32>
    tpu.vector_store %arg5[%55, %c0_15], %54 {strides = array<i32>} : memref<32x128xf32, #tpu.memory_space<vmem>>, vector<8x128xf32>,
    %c2_i32 = arith.constant 2 : i32
    %c8_i32_16 = arith.constant 8 : i32
    %57 = arith.muli %c2_i32, %c8_i32_16 : i32
    %58 = tpu.assume_multiple %57, 8 : i32
    %59 = arith.index_cast %58 : i32 to index
    %c0_17 = arith.constant 0 : index
    %60 = vector.load %arg1[%59, %c0_17] : memref<32x128xf32, #tpu.memory_space<vmem>>, vector<8x128xf32>
    %cst_18 = arith.constant dense<0.000000e+00> : vector<8x128xf32>
    %61 = tpu.matmul %53, %3, %cst_18 {dimension_numbers = #tpu.dot_dimension_numbers<[1], [0], [0], [1], [0, 0, 1, 1], [], []>} : vector<8x32xf32>, vector<32x128xf32>, vector<8x128xf32> -> vector<8x128xf32>
    %62 = arith.addf %60, %61 : vector<8x128xf32>
    %63 = vector.extract_strided_slice %62 {offsets = [0, 0], sizes = [8, 96], strides = [1, 1]} : vector<8x128xf32> to vector<8x96xf32>
    %64 = arith.negf %63 : vector<8x96xf32>
    %65 = math.exp %64 : vector<8x96xf32>
    %cst_19 = arith.constant 1.000000e+00 : f32
    %66 = vector.broadcast %cst_19 : f32 to vector<8x96xf32>
    %67 = arith.addf %66, %65 : vector<8x96xf32>
    %68 = arith.divf %66, %67 : vector<8x96xf32>
    %69 = vector.extract_strided_slice %62 {offsets = [0, 96], sizes = [8, 32], strides = [1, 1]} : vector<8x128xf32> to vector<8x32xf32>
    %70 = math.tanh %69 : vector<8x32xf32>
    %71 = vector.extract_strided_slice %68 {offsets = [0, 0], sizes = [8, 32], strides = [1, 1]} : vector<8x96xf32> to vector<8x32xf32>
    %72 = vector.extract_strided_slice %68 {offsets = [0, 32], sizes = [8, 32], strides = [1, 1]} : vector<8x96xf32> to vector<8x32xf32>
    %73 = vector.extract_strided_slice %68 {offsets = [0, 64], sizes = [8, 32], strides = [1, 1]} : vector<8x96xf32> to vector<8x32xf32>
    %74 = arith.mulf %72, %51 : vector<8x32xf32>
    %75 = arith.mulf %71, %70 : vector<8x32xf32>
    %76 = arith.addf %74, %75 : vector<8x32xf32>
    %77 = math.tanh %76 : vector<8x32xf32>
    %78 = arith.mulf %77, %73 : vector<8x32xf32>
    %79 = tpu.concatenate %78, %4 in 1 : vector<8x32xf32>, vector<8x96xf32> -> vector<8x128xf32>
    %80 = arith.index_cast %58 : i32 to index
    %c0_20 = arith.constant 0 : index
    %81 = vector.load %arg5[%80, %c0_20] : memref<32x128xf32, #tpu.memory_space<vmem>>, vector<8x128xf32>
    tpu.vector_store %arg5[%80, %c0_20], %79 {strides = array<i32>} : memref<32x128xf32, #tpu.memory_space<vmem>>, vector<8x128xf32>,
    %c3_i32 = arith.constant 3 : i32
    %c8_i32_21 = arith.constant 8 : i32
    %82 = arith.muli %c3_i32, %c8_i32_21 : i32
    %83 = tpu.assume_multiple %82, 8 : i32
    %84 = arith.index_cast %83 : i32 to index
    %c0_22 = arith.constant 0 : index
    %85 = vector.load %arg1[%84, %c0_22] : memref<32x128xf32, #tpu.memory_space<vmem>>, vector<8x128xf32>
    %cst_23 = arith.constant dense<0.000000e+00> : vector<8x128xf32>
    %86 = tpu.matmul %78, %3, %cst_23 {dimension_numbers = #tpu.dot_dimension_numbers<[1], [0], [0], [1], [0, 0, 1, 1], [], []>} : vector<8x32xf32>, vector<32x128xf32>, vector<8x128xf32> -> vector<8x128xf32>
    %87 = arith.addf %85, %86 : vector<8x128xf32>
    %88 = vector.extract_strided_slice %87 {offsets = [0, 0], sizes = [8, 96], strides = [1, 1]} : vector<8x128xf32> to vector<8x96xf32>
    %89 = arith.negf %88 : vector<8x96xf32>
    %90 = math.exp %89 : vector<8x96xf32>
    %cst_24 = arith.constant 1.000000e+00 : f32
    %91 = vector.broadcast %cst_24 : f32 to vector<8x96xf32>
    %92 = arith.addf %91, %90 : vector<8x96xf32>
    %93 = arith.divf %91, %92 : vector<8x96xf32>
    %94 = vector.extract_strided_slice %87 {offsets = [0, 96], sizes = [8, 32], strides = [1, 1]} : vector<8x128xf32> to vector<8x32xf32>
    %95 = math.tanh %94 : vector<8x32xf32>
    %96 = vector.extract_strided_slice %93 {offsets = [0, 0], sizes = [8, 32], strides = [1, 1]} : vector<8x96xf32> to vector<8x32xf32>
    %97 = vector.extract_strided_slice %93 {offsets = [0, 32], sizes = [8, 32], strides = [1, 1]} : vector<8x96xf32> to vector<8x32xf32>
    %98 = vector.extract_strided_slice %93 {offsets = [0, 64], sizes = [8, 32], strides = [1, 1]} : vector<8x96xf32> to vector<8x32xf32>
    %99 = arith.mulf %97, %76 : vector<8x32xf32>
    %100 = arith.mulf %96, %95 : vector<8x32xf32>
    %101 = arith.addf %99, %100 : vector<8x32xf32>
    %102 = math.tanh %101 : vector<8x32xf32>
    %103 = arith.mulf %102, %98 : vector<8x32xf32>
    %104 = tpu.concatenate %103, %4 in 1 : vector<8x32xf32>, vector<8x96xf32> -> vector<8x128xf32>
    %105 = arith.index_cast %83 : i32 to index
    %c0_25 = arith.constant 0 : index
    %106 = vector.load %arg5[%105, %c0_25] : memref<32x128xf32, #tpu.memory_space<vmem>>, vector<8x128xf32>
    tpu.vector_store %arg5[%105, %c0_25], %104 {strides = array<i32>} : memref<32x128xf32, #tpu.memory_space<vmem>>, vector<8x128xf32>,
    %c4_i32 = arith.constant 4 : i32
    %c0_26 = arith.constant 0 : index
    %c0_27 = arith.constant 0 : index
    %107 = vector.load %arg8[%c0_26, %c0_27] : memref<8x32xf32, #tpu.memory_space<vmem>>, vector<8x32xf32>
    tpu.vector_store %arg8[%c0_26, %c0_27], %103 {strides = array<i32>} : memref<8x32xf32, #tpu.memory_space<vmem>>, vector<8x32xf32>,
    %c0_28 = arith.constant 0 : index
    %c0_29 = arith.constant 0 : index
    %108 = vector.load %arg9[%c0_28, %c0_29] : memref<8x32xf32, #tpu.memory_space<vmem>>, vector<8x32xf32>
    tpu.vector_store %arg9[%c0_28, %c0_29], %101 {strides = array<i32>} : memref<8x32xf32, #tpu.memory_space<vmem>>, vector<8x32xf32>,
    %c1_i32_30 = arith.constant 1 : i32
    %109 = arith.cmpi eq, %arg0, %c1_i32_30 : i32
    %110 = arith.extui %109 : i1 to i32
    %c0_i32_31 = arith.constant 0 : i32
    %111 = arith.cmpi ne, %110, %c0_i32_31 : i32
    scf.if %111 {
      %c0_32 = arith.constant 0 : index
      %c0_33 = arith.constant 0 : index
      %112 = vector.load %arg6[%c0_32, %c0_33] : memref<8x32xf32, #tpu.memory_space<vmem>>, vector<8x32xf32>
      tpu.vector_store %arg6[%c0_32, %c0_33], %103 {strides = array<i32>} : memref<8x32xf32, #tpu.memory_space<vmem>>, vector<8x32xf32>,
      %c0_34 = arith.constant 0 : index
      %c0_35 = arith.constant 0 : index
      %113 = vector.load %arg7[%c0_34, %c0_35] : memref<8x32xf32, #tpu.memory_space<vmem>>, vector<8x32xf32>
      tpu.vector_store %arg7[%c0_34, %c0_35], %101 {strides = array<i32>} : memref<8x32xf32, #tpu.memory_space<vmem>>, vector<8x32xf32>,
    } else {
    }
    return
  }
  func.func @transform_0(%arg0: i32) -> (i32, i32) {
    %c0_i32 = arith.constant 0 : i32
    %c0_i32_0 = arith.constant 0 : i32
    return %arg0, %c0_i32 : i32, i32
  }
  func.func @transform_1(%arg0: i32) -> (i32, i32) {
    %c0_i32 = arith.constant 0 : i32
    %c0_i32_0 = arith.constant 0 : i32
    %c0_i32_1 = arith.constant 0 : i32
    return %c0_i32, %c0_i32_0 : i32, i32
  }
  func.func @transform_2(%arg0: i32) -> (i32, i32) {
    %c0_i32 = arith.constant 0 : i32
    %c0_i32_0 = arith.constant 0 : i32
    %c0_i32_1 = arith.constant 0 : i32
    return %c0_i32, %c0_i32_0 : i32, i32
  }
  func.func @transform_3(%arg0: i32) -> (i32, i32) {
    %c0_i32 = arith.constant 0 : i32
    %c0_i32_0 = arith.constant 0 : i32
    %c0_i32_1 = arith.constant 0 : i32
    return %c0_i32, %c0_i32_0 : i32, i32
  }
  func.func @transform_4(%arg0: i32) -> (i32, i32) {
    %c0_i32 = arith.constant 0 : i32
    %c0_i32_0 = arith.constant 0 : i32
    return %arg0, %c0_i32 : i32, i32
  }
  func.func @transform_5(%arg0: i32) -> (i32, i32) {
    %c0_i32 = arith.constant 0 : i32
    %c0_i32_0 = arith.constant 0 : i32
    %c0_i32_1 = arith.constant 0 : i32
    return %c0_i32, %c0_i32_0 : i32, i32
  }
  func.func @transform_6(%arg0: i32) -> (i32, i32) {
    %c0_i32 = arith.constant 0 : i32
    %c0_i32_0 = arith.constant 0 : i32
    %c0_i32_1 = arith.constant 0 : i32
    return %c0_i32, %c0_i32_0 : i32, i32
  }
}

</mosaic_0001>

<llo_original>
// kernel: tpu_custom_call.1
$region0: #{tpu_custom_call.1}
  #allocation0 [shape = 'u32[]', space=smem, size = 0x4, offset = 0x4, fixed_abs, tag = 'smem constant byte address 0x4 - core index']
  #allocation1 [shape = 'u32[144,128]{1,0:T(1,128)}', space=vmem, size = 0x12000, scoped, tag = 'internal scratch']
  #allocation2 [shape = 'f32[8,32]{1,0:T(8,128)}', space=vmem, size = 0x1000, scoped, tag = 'scratch operand']
  #allocation3 [shape = 'f32[8,32]{1,0:T(8,128)}', space=vmem, size = 0x1000, scoped, tag = 'scratch operand']
  %s0 = inlined_call_operand.hbm [shape: f32[64,128], index: 0, kind: input, shape index: {}]
  %s1 = inlined_call_operand.hbm [shape: f32[32,128], index: 1, kind: input, shape index: {}]
  %s2 = inlined_call_operand.hbm [shape: f32[8,32], index: 2, kind: input, shape index: {}]
  %s3 = inlined_call_operand.vmem [shape: f32[8,32], index: 3, kind: input, shape index: {}]
  %s4 = inlined_call_operand.hbm [shape: f32[64,128], index: 4, kind: output, shape index: {0}]
  %s5 = inlined_call_operand.hbm [shape: f32[8,32], index: 5, kind: output, shape index: {1}]
  %s6 = inlined_call_operand.hbm [shape: f32[8,32], index: 6, kind: output, shape index: {2}]
  %7 = xla_tuple %s4, %s5, %s6
  %s8 = sld [smem:[#allocation0]]
  $region85: #{tpu_custom_call.1} parent=0
    _
  %s10 = ssub.s32 1, %s8
  %s11 = scalar_select 0, %s10, %s8
  $region1: #{tpu_custom_call.1} parent=0
    #allocation4 [shape = 'u8[32768]{0}', space=vmem, size = 0x8000, scoped, tag = 'input window, operand 0']
    #allocation5 [shape = 's32[2]{0}', space=sflag, size = 0x8, scoped, tag = 'scoped memory for tpu_custom_call.1']
    #allocation6 [shape = 's32[2]{0}', space=sflag, size = 0x8, scoped, tag = 'scoped memory for tpu_custom_call.1']
    #allocation7 [shape = 'u8[16384]{0}', space=vmem, size = 0x4000, scoped, tag = 'input window, operand 1, single buffered']
    #allocation8 [shape = 's32[1]{0}', space=sflag, size = 0x4, scoped, tag = 'scoped memory for tpu_custom_call.1']
    #allocation9 [shape = 'u8[4096]{0}', space=vmem, size = 0x1000, scoped, tag = 'input window, operand 2, single buffered']
    #allocation10 [shape = 'u8[32768]{0}', space=vmem, size = 0x8000, scoped, tag = 'output window, operand 0']
    #allocation11 [shape = 'u8[4096]{0}', space=vmem, size = 0x1000, scoped, tag = 'output window, operand 1, single buffered']
    #allocation12 [shape = 's32[1]{0}', space=sflag, size = 0x4, scoped, tag = 'scoped memory for tpu_custom_call.1']
    #allocation13 [shape = 'u8[4096]{0}', space=vmem, size = 0x1000, scoped, tag = 'output window, operand 2, single buffered']
    %12 = vsyncpa [#allocation5], 0
    %s13 = scalar_lea.sflag [#allocation5], 1
    %14 = vsyncpa %s13, 0
    %15 = vsyncpa [#allocation8], 0
    %16 = vsyncpa [#allocation6], 0
    %s17 = scalar_lea.sflag [#allocation6], 1
    %18 = vsyncpa %s17, 0
    %19 = vsyncpa [#allocation12], 0
    loop: start=0, step=1, limit=4
    $region2: #{tpu_custom_call.1} parent=1 // loop_pre_header
      _
    $region3: #{tpu_custom_call.1} parent=1 // loop_header
      %s21 = sphi 0, %s25
      %p22 = scmp.ge.s32.totalorder %s21, 4
      %s31 = sphi 0, %s33
      %s34 = sphi 0, %s31
      %s35 = sphi 0, %s34
      %s51 = sphi 0, %s35
      %s55 = sphi 0, %s55
      %s57 = sphi 0, %s55
      %s58 = sphi 0, %s57
      %s72 = sphi 0, %s58
      %s76 = sphi 0, %s76
      %s78 = sphi 0, %s76
      %s79 = sphi 0, %s78
      %s93 = sphi 0, %s79
      %s97 = sphi 0, %s97
      %s99 = sphi 0, %s97
      %s100 = sphi 0, %s99
      %s114 = sphi 0, %s100
      %s120 = sphi 0, %s122
      %s123 = sphi 0, %s120
      %s124 = sphi 0, %s123
      %s140 = sphi 0, %s124
      %s144 = sphi 0, %s144
      %s146 = sphi 0, %s144
      %s147 = sphi 0, %s146
      %s161 = sphi 0, %s147
      %s165 = sphi 0, %s165
      %s167 = sphi 0, %s165
      %s168 = sphi 0, %s167
      %s182 = sphi 0, %s168
    $region4: #{tpu_custom_call.1} parent=1 // loop_header_branch
      %24 = sbr.rel (%p22) target = $region8
    $region5: #{tpu_custom_call.1} parent=1 // loop_body
      %s26 = ssub.s32 %s21, 1
      %s27 = ssub.s32 %s21, 2
      %s28 = sadd.s32 %s21, 1
      %s29 = ssub.s32 %s21, %s28
      %p30 = scmp.eq.s32.totalorder %s29, 0
      %s32 = sadd.s32 %s31, 1
      %s33 = scalar_select %p30, %s31, %s32
      %p36 = pneg %p30
      %p37 = scmp.eq.s32.totalorder %s21, 1
      %p38 = por %p36, %p37
      %p39 = scmp.ne.s32.totalorder %s31, %s34
      %p40 = scmp.eq.s32.totalorder %s21, 0
      %p41 = por %p39, %p40
      %p42 = scmp.ne.s32.totalorder %s31, %s34
      %p43 = scmp.eq.s32.totalorder %s26, 1
      %p44 = por %p42, %p43
      %p45 = scmp.ne.s32.totalorder %s34, %s35
      %p46 = scmp.eq.s32.totalorder %s26, 0
      %p47 = por %p45, %p46
      %p48 = scmp.ne.s32.totalorder %s34, %s35
      %p49 = scmp.eq.s32.totalorder %s27, 1
      %p50 = por %p48, %p49
      %p52 = scmp.ne.s32.totalorder %s35, %s51
      %p53 = scmp.eq.s32.totalorder %s27, 0
      %p54 = por %p52, %p53
      %s56 = sadd.s32 %s55, 1
      %p59 = scmp.eq.s32.totalorder %s21, 1
      %p60 = scmp.ne.s32.totalorder %s55, %s57
      %p61 = scmp.eq.s32.totalorder %s21, 0
      %p62 = por %p60, %p61
      %p63 = scmp.ne.s32.totalorder %s55, %s57
      %p64 = scmp.eq.s32.totalorder %s26, 1
      %p65 = por %p63, %p64
      %p66 = scmp.ne.s32.totalorder %s57, %s58
      %p67 = scmp.eq.s32.totalorder %s26, 0
      %p68 = por %p66, %p67
      %p69 = scmp.ne.s32.totalorder %s57, %s58
      %p70 = scmp.eq.s32.totalorder %s27, 1
      %p71 = por %p69, %p70
      %p73 = scmp.ne.s32.totalorder %s58, %s72
      %p74 = scmp.eq.s32.totalorder %s27, 0
      %p75 = por %p73, %p74
      %s77 = sadd.s32 %s76, 1
      %p80 = scmp.eq.s32.totalorder %s21, 1
      %p81 = scmp.ne.s32.totalorder %s76, %s78
      %p82 = scmp.eq.s32.totalorder %s21, 0
      %p83 = por %p81, %p82
      %p84 = scmp.ne.s32.totalorder %s76, %s78
      %p85 = scmp.eq.s32.totalorder %s26, 1
      %p86 = por %p84, %p85
      %p87 = scmp.ne.s32.totalorder %s78, %s79
      %p88 = scmp.eq.s32.totalorder %s26, 0
      %p89 = por %p87, %p88
      %p90 = scmp.ne.s32.totalorder %s78, %s79
      %p91 = scmp.eq.s32.totalorder %s27, 1
      %p92 = por %p90, %p91
      %p94 = scmp.ne.s32.totalorder %s79, %s93
      %p95 = scmp.eq.s32.totalorder %s27, 0
      %p96 = por %p94, %p95
      %s98 = sadd.s32 %s97, 1
      %p101 = scmp.eq.s32.totalorder %s21, 1
      %p102 = scmp.ne.s32.totalorder %s97, %s99
      %p103 = scmp.eq.s32.totalorder %s21, 0
      %p104 = por %p102, %p103
      %p105 = scmp.ne.s32.totalorder %s97, %s99
      %p106 = scmp.eq.s32.totalorder %s26, 1
      %p107 = por %p105, %p106
      %p108 = scmp.ne.s32.totalorder %s99, %s100
      %p109 = scmp.eq.s32.totalorder %s26, 0
      %p110 = por %p108, %p109
      %p111 = scmp.ne.s32.totalorder %s99, %s100
      %p112 = scmp.eq.s32.totalorder %s27, 1
      %p113 = por %p111, %p112
      %p115 = scmp.ne.s32.totalorder %s100, %s114
      %p116 = scmp.eq.s32.totalorder %s27, 0
      %p117 = por %p115, %p116
      %s118 = ssub.s32 %s21, %s28
      %p119 = scmp.eq.s32.totalorder %s118, 0
      %s121 = sadd.s32 %s120, 1
      %s122 = scalar_select %p119, %s120, %s121
      %p125 = pneg %p119
      %p126 = scmp.eq.s32.totalorder %s21, 1
      %p127 = por %p125, %p126
      %p128 = scmp.ne.s32.totalorder %s120, %s123
      %p129 = scmp.eq.s32.totalorder %s21, 0
      %p130 = por %p128, %p129
      %p131 = scmp.ne.s32.totalorder %s120, %s123
      %p132 = scmp.eq.s32.totalorder %s26, 1
      %p133 = por %p131, %p132
      %p134 = scmp.ne.s32.totalorder %s123, %s124
      %p135 = scmp.eq.s32.totalorder %s26, 0
      %p136 = por %p134, %p135
      %p137 = scmp.ne.s32.totalorder %s123, %s124
      %p138 = scmp.eq.s32.totalorder %s27, 1
      %p139 = por %p137, %p138
      %p141 = scmp.ne.s32.totalorder %s124, %s140
      %p142 = scmp.eq.s32.totalorder %s27, 0
      %p143 = por %p141, %p142
      %s145 = sadd.s32 %s144, 1
      %p148 = scmp.eq.s32.totalorder %s21, 1
      %p149 = scmp.ne.s32.totalorder %s144, %s146
      %p150 = scmp.eq.s32.totalorder %s21, 0
      %p151 = por %p149, %p150
      %p152 = scmp.ne.s32.totalorder %s144, %s146
      %p153 = scmp.eq.s32.totalorder %s26, 1
      %p154 = por %p152, %p153
      %p155 = scmp.ne.s32.totalorder %s146, %s147
      %p156 = scmp.eq.s32.totalorder %s26, 0
      %p157 = por %p155, %p156
      %p158 = scmp.ne.s32.totalorder %s146, %s147
      %p159 = scmp.eq.s32.totalorder %s27, 1
      %p160 = por %p158, %p159
      %p162 = scmp.ne.s32.totalorder %s147, %s161
      %p163 = scmp.eq.s32.totalorder %s27, 0
      %p164 = por %p162, %p163
      %s166 = sadd.s32 %s165, 1
      %p169 = scmp.eq.s32.totalorder %s21, 1
      %p170 = scmp.ne.s32.totalorder %s165, %s167
      %p171 = scmp.eq.s32.totalorder %s21, 0
      %p172 = por %p170, %p171
      %p173 = scmp.ne.s32.totalorder %s165, %s167
      %p174 = scmp.eq.s32.totalorder %s26, 1
      %p175 = por %p173, %p174
      %p176 = scmp.ne.s32.totalorder %s167, %s168
      %p177 = scmp.eq.s32.totalorder %s26, 0
      %p178 = por %p176, %p177
      %p179 = scmp.ne.s32.totalorder %s167, %s168
      %p180 = scmp.eq.s32.totalorder %s27, 1
      %p181 = por %p179, %p180
      %p183 = scmp.ne.s32.totalorder %s168, %s182
      %p184 = scmp.eq.s32.totalorder %s27, 0
      %p185 = por %p183, %p184
      %p186 = scmp.le.s32.totalorder 1, %s21
      %p187 = scmp.lt.s32.totalorder %s21, 3
      %p188 = pnand %p186, %p187
      %p189 = pneg %p188
      // Predicated region
      $region9: #{tpu_custom_call.1} parent=5 // pred_check
        _
      $region10: #{tpu_custom_call.1} parent=5 // pred_check_branch
        %191 = sbr.rel (%p188) target = $region12
      $region11: #{tpu_custom_call.1} parent=5 // pred_region
        %s192 = ssub.s32 %s21, 1
        // Predicated region
        $region13: #{tpu_custom_call.1} parent=11 // pred_check
          %p193 = pneg %p68
        $region14: #{tpu_custom_call.1} parent=11 // pred_check_branch
          %195 = sbr.rel (%p193) target = $region16
        $region15: #{tpu_custom_call.1} parent=11 // pred_region
          %s197 = ssub.s32 512, 512
          %198 = vsyncadd [#allocation8], %s197
          %s199 = sshll.u32 [#allocation7], 4
          %s200 = int_to_ptr.vmem [resolvable:$true] %s199
          %205 = dma.hbm_to_vmem [thread:$0]  %s1, 512, %s200, [#allocation8], 128, 128, 8
        $region16: #{tpu_custom_call.1} parent=11 // pred_fallthru
          _
        // Predicated region
        $region17: #{tpu_custom_call.1} parent=11 // pred_check
          %p206 = pneg %p89
        $region18: #{tpu_custom_call.1} parent=11 // pred_check_branch
          %208 = sbr.rel (%p206) target = $region20
        $region19: #{tpu_custom_call.1} parent=11 // pred_region
          %s210 = ssub.s32 128, 128
          %211 = vsyncadd [#allocation8], %s210
          %s213 = sshll.u32 [#allocation9], 4
          %s214 = int_to_ptr.vmem [resolvable:$true] %s213
          %216 = dma.hbm_to_vmem [thread:$0]  %s2, 128, %s214, [#allocation8]
        $region20: #{tpu_custom_call.1} parent=11 // pred_fallthru
          _
        // Predicated region
        $region21: #{tpu_custom_call.1} parent=11 // pred_check
          %p217 = pneg %p110
        $region22: #{tpu_custom_call.1} parent=11 // pred_check_branch
          %219 = sbr.rel (%p217) target = $region24
        $region23: #{tpu_custom_call.1} parent=11 // pred_region
          _
        $region24: #{tpu_custom_call.1} parent=11 // pred_fallthru
          _
      $region12: #{tpu_custom_call.1} parent=5 // pred_fallthru
        _
      %p220 = scmp.lt.s32.totalorder %s21, 2
      // Predicated region
      $region25: #{tpu_custom_call.1} parent=5 // pred_check
        %p221 = pneg %p220
      $region26: #{tpu_custom_call.1} parent=5 // pred_check_branch
        %223 = sbr.rel (%p221) target = $region28
      $region27: #{tpu_custom_call.1} parent=5 // pred_region
        // Predicated region
        $region29: #{tpu_custom_call.1} parent=27 // pred_check
          %p224 = pneg %p41
        $region30: #{tpu_custom_call.1} parent=27 // pred_check_branch
          %226 = sbr.rel (%p224) target = $region32
        $region31: #{tpu_custom_call.1} parent=27 // pred_region
          %s227 = sand.u32 %s31, 1
          %s228 = scalar_lea.sflag [#allocation5], %s227
          %s229 = sand.u32 %s31, 1
          %s230 = smul.addr %s229, 32
          %s231 = scalar_lea.vmem [#allocation4], %s230
          %s232 = smul.u32 4, %s21
          %s234 = ssub.s32 512, 512
          %235 = vsyncadd %s228, %s234
          %s236 = smul.addr %s232, 128
          %s237 = scalar_lea.hbm %s0, %s236
          %s238 = sshll.u32 %s231, 4
          %s239 = int_to_ptr.vmem [resolvable:$true] %s238
          %244 = dma.hbm_to_vmem [thread:$0]  %s237, 512, %s239, %s228, 128, 128, 8
        $region32: #{tpu_custom_call.1} parent=27 // pred_fallthru
          _
      $region28: #{tpu_custom_call.1} parent=5 // pred_fallthru
        _
      %p245 = scmp.le.s32.totalorder 1, %s21
      %p246 = scmp.lt.s32.totalorder %s21, 3
      %p247 = pnand %p245, %p246
      %p248 = pneg %p247
      // Predicated region
      $region33: #{tpu_custom_call.1} parent=5 // pred_check
        _
      $region34: #{tpu_custom_call.1} parent=5 // pred_check_branch
        %250 = sbr.rel (%p247) target = $region36
      $region35: #{tpu_custom_call.1} parent=5 // pred_region
        %s251 = ssub.s32 %s21, 1
        %s252 = sand.u32 %s34, 1
        %s253 = scalar_lea.sflag [#allocation5], %s252
        %s254 = sand.u32 %s34, 1
        %s255 = smul.addr %s254, 32
        %s256 = scalar_lea.vmem [#allocation4], %s255
        // Predicated region
        $region37: #{tpu_custom_call.1} parent=35 // pred_check
          %p257 = pneg %p47
        $region38: #{tpu_custom_call.1} parent=35 // pred_check_branch
          %259 = sbr.rel (%p257) target = $region40
        $region39: #{tpu_custom_call.1} parent=35 // pred_region
          %260 = dma.done %s253, 512
        $region40: #{tpu_custom_call.1} parent=35 // pred_fallthru
          _
        // Predicated region
        $region41: #{tpu_custom_call.1} parent=35 // pred_check
          %p261 = pneg %p68
        $region42: #{tpu_custom_call.1} parent=35 // pred_check_branch
          %263 = sbr.rel (%p261) target = $region44
        $region43: #{tpu_custom_call.1} parent=35 // pred_region
          %264 = dma.done [#allocation8], 512
        $region44: #{tpu_custom_call.1} parent=35 // pred_fallthru
          _
        // Predicated region
        $region45: #{tpu_custom_call.1} parent=35 // pred_check
          %p265 = pneg %p89
        $region46: #{tpu_custom_call.1} parent=35 // pred_check_branch
          %267 = sbr.rel (%p265) target = $region48
        $region47: #{tpu_custom_call.1} parent=35 // pred_region
          %268 = dma.done [#allocation8], 128
        $region48: #{tpu_custom_call.1} parent=35 // pred_fallthru
          _
        %s269 = sand.u32 %s34, 1
        %s270 = scalar_lea.sflag [#allocation5], %s269
        %s271 = sand.u32 %s34, 1
        %s272 = smul.addr %s271, 32
        %s273 = scalar_lea.vmem [#allocation4], %s272
        %p274 = pneg %p47
        %p275 = pneg %p44
        %p276 = pneg %p68
        %p277 = pneg %p65
        %p278 = pneg %p89
        %p279 = pneg %p86
        %p280 = pneg %p110
        %p281 = pneg %p107
        %p282 = pneg %p136
        %p283 = pneg %p133
        %s284 = sand.u32 %s123, 1
        %s285 = scalar_lea.sflag [#allocation6], %s284
        %s286 = sand.u32 %s123, 1
        %s287 = smul.addr %s286, 32
        %s288 = scalar_lea.vmem [#allocation10], %s287
        %p289 = pneg %p157
        %p290 = pneg %p154
        %p291 = pneg %p178
        %p292 = pneg %p175
        %s293 = smul.u32 4, %s26
        %s294 = smul.u32 4, %s26
        %p295 = scmp.eq.s32.totalorder %s26, 0
        // Predicated region
        $region49: #{tpu_custom_call.1} parent=35 // pred_check
          %p296 = pneg %p295
        $region50: #{tpu_custom_call.1} parent=35 // pred_check_branch
          %298 = sbr.rel (%p296) target = $region52
        $region51: #{tpu_custom_call.1} parent=35 // pred_region
          %v299 = vld [vmem:[#allocation9] sm:$0xff]
          %vm300 = vcmask 261120
          %301 = vst.msk [vmem:[#allocation2] sm:$0xff] %vm300, %v299
          %v302 = vld [vmem:[%s3] sm:$0xff]
          %303 = vst.msk [vmem:[#allocation3] sm:$0xff] %vm300, %v302
        $region52: #{tpu_custom_call.1} parent=35 // pred_fallthru
          _
        %v304 = vld [vmem:[#allocation7] sm:$0xff]
        %v305 = vld [vmem:[#allocation7 + $0x8] sm:$0xff]
        %v306 = vld [vmem:[#allocation7 + $0x10] sm:$0xff]
        %v307 = vld [vmem:[#allocation7 + $0x18] sm:$0xff]
        %v308 = vld [vmem:[#allocation2] sm:$0xff]
        %v309 = vld [vmem:[#allocation3] sm:$0xff]
        %v310 = vld [vmem:[%s256] sm:$0xff]
        %vm311 = vcmask 261120
        %v313 = vsel %vm311, %v308, 0
        %315 = vmatprep.subr.mxu0 0.0
        %316 = vmatpush1.msra.mxu0 %v304
        %317 = vmatprep.subr.mxu0 0.0
        %318 = vmatpush1.msra.mxu0 %v305
        %319 = vmatprep.subr.mxu0 0.0
        %320 = vmatpush1.msra.mxu0 %v306
        %321 = vmatprep.subr.mxu0 0.0
        %322 = vmatpush1.msra.mxu0 %v307
        %323 = vmatprep.subr.mxu0 0.0
        %324 = vmatpush1.msra.mxu0 0.0
        %325 = vmatprep.subr.mxu0 0.0
        %326 = vmatpush1.msra.mxu0 0.0
        %327 = vmatprep.subr.mxu0 0.0
        %328 = vmatpush1.msra.mxu0 0.0
        %329 = vmatprep.subr.mxu0 0.0
        %330 = vmatpush1.msra.mxu0 0.0
        %331 = vmatprep.subr.mxu0 0.0
        %332 = vmatpush1.msra.mxu0 0.0
        %333 = vmatprep.subr.mxu0 0.0
        %334 = vmatpush1.msra.mxu0 0.0
        %335 = vmatprep.subr.mxu0 0.0
        %336 = vmatpush1.msra.mxu0 0.0
        %337 = vmatprep.subr.mxu0 0.0
        %338 = vmatpush1.msra.mxu0 0.0
        %339 = vmatprep.subr.mxu0 0.0
        %340 = vmatpush1.msra.mxu0 0.0
        %341 = vmatprep.subr.mxu0 0.0
        %342 = vmatpush1.msra.mxu0 0.0
        %343 = vmatprep.subr.mxu0 0.0
        %344 = vmatpush1.msra.mxu0 0.0
        %345 = vmatprep.subr.mxu0 0.0
        %346 = vmatpush1.msra.mxu0 0.0
        %347 = vmatprep.subr.mxu0 0.0
        %348 = vmatpush1.msra.mxu0 0.0
        %349 = vmatprep.subr.mxu0 0.0
        %350 = vmatpush1.msra.mxu0 0.0
        %351 = vmatprep.subr.mxu0 0.0
        %352 = vmatpush1.msra.mxu0 0.0
        %353 = vmatprep.subr.mxu0 0.0
        %354 = vmatpush1.msra.mxu0 0.0
        %355 = vmatprep.subr.mxu0 0.0
        %356 = vmatpush1.msra.mxu0 0.0
        %357 = vmatprep.subr.mxu0 0.0
        %358 = vmatpush1.msra.mxu0 0.0
        %359 = vmatprep.subr.mxu0 0.0
        %360 = vmatpush1.msra.mxu0 0.0
        %361 = vmatprep.subr.mxu0 0.0
        %362 = vmatpush1.msra.mxu0 0.0
        %363 = vmatprep.subr.mxu0 0.0
        %364 = vmatpush1.msra.mxu0 0.0
        %365 = vmatprep.subr.mxu0 0.0
        %366 = vmatpush1.msra.mxu0 0.0
        %367 = vmatprep.subr.mxu0 0.0
        %368 = vmatpush1.msra.mxu0 0.0
        %369 = vmatprep.subr.mxu0 0.0
        %370 = vmatpush1.msra.mxu0 0.0
        %371 = vmatprep.subr.mxu0 0.0
        %372 = vmatpush1.msra.mxu0 0.0
        %373 = vmatprep.subr.mxu0 0.0
        %374 = vmatpush1.msra.mxu0 0.0
        %375 = vmatprep.subr.mxu0 0.0
        %376 = vmatpush1.msra.mxu0 0.0
        %377 = vmatprep.subr.mxu0 0.0
        %378 = vmatpush1.msra.mxu0 0.0
        %379 = vmatprep.mubr.f32.mxu0 0.0
        %380 = vmatmul.mubr.f32.gmra.mrb[0].mxu0 %v313
        %v381 = vpop.f32.mrb[0].mxu0
        %v382 = vadd.f32 0.0, %v381
        %v383 = vpop.f32.mrb[0].mxu0
        %384 = vdwg.mxu0
        %v385 = vadd.f32 %v310, %v382
        %v386 = vxor.u32 %v385, 2147483648
        %v387 = vmul.f32 %v386, 1.442695
        %v388 = vpow.pop %v387
        %v389 = vadd.f32 %v388, 1.0
        %v390 = vrcp.pop %v389
        %v391 = vmul.f32 1.0, %v390
        %v392 = vtanh.pop %v385
        %394 = vrot.lane.b32.xlu0 %v309, 32
        %v395 = vpop.permute.xlu0 %394
        %v397 = vmul.f32 %v391, %v395
        %399 = vrot.lane.b32.xlu0 %v392, 32
        %v400 = vpop.permute.xlu0 %399
        %v402 = vmul.f32 %v391, %v400
        %404 = vrot.lane.b32.xlu0 %v402, 32
        %v405 = vpop.permute.xlu0 %404
        %v407 = vadd.f32 %v397, %v405
        %v408 = vtanh.pop %v407
        %410 = vrot.lane.b32.xlu0 %v391, 96
        %v411 = vpop.permute.xlu0 %410
        %v413 = vmul.f32 %v408, %v411
        %415 = vrot.lane.b32.xlu0 %v413, 96
        %v416 = vpop.permute.xlu0 %415
        %v418 = vsel %vm311, %v416, 0.0
        %419 = vst [vmem:[%s288] sm:$0xff] %v418
        %s420 = scalar_lea.vmem %s256, 8 [#allocation4]
        %v421 = vld [vmem:[%s420] sm:$0xff]
        %v422 = vsel %vm311, %v416, 0
        %424 = vmatprep.subr.mxu0 0.0
        %425 = vmatpush1.msra.mxu0 %v304
        %426 = vmatprep.subr.mxu0 0.0
        %427 = vmatpush1.msra.mxu0 %v305
        %428 = vmatprep.subr.mxu0 0.0
        %429 = vmatpush1.msra.mxu0 %v306
        %430 = vmatprep.subr.mxu0 0.0
        %431 = vmatpush1.msra.mxu0 %v307
        %432 = vmatprep.subr.mxu0 0.0
        %433 = vmatpush1.msra.mxu0 0.0
        %434 = vmatprep.subr.mxu0 0.0
        %435 = vmatpush1.msra.mxu0 0.0
        %436 = vmatprep.subr.mxu0 0.0
        %437 = vmatpush1.msra.mxu0 0.0
        %438 = vmatprep.subr.mxu0 0.0
        %439 = vmatpush1.msra.mxu0 0.0
        %440 = vmatprep.subr.mxu0 0.0
        %441 = vmatpush1.msra.mxu0 0.0
        %442 = vmatprep.subr.mxu0 0.0
        %443 = vmatpush1.msra.mxu0 0.0
        %444 = vmatprep.subr.mxu0 0.0
        %445 = vmatpush1.msra.mxu0 0.0
        %446 = vmatprep.subr.mxu0 0.0
        %447 = vmatpush1.msra.mxu0 0.0
        %448 = vmatprep.subr.mxu0 0.0
        %449 = vmatpush1.msra.mxu0 0.0
        %450 = vmatprep.subr.mxu0 0.0
        %451 = vmatpush1.msra.mxu0 0.0
        %452 = vmatprep.subr.mxu0 0.0
        %453 = vmatpush1.msra.mxu0 0.0
        %454 = vmatprep.subr.mxu0 0.0
        %455 = vmatpush1.msra.mxu0 0.0
        %456 = vmatprep.subr.mxu0 0.0
        %457 = vmatpush1.msra.mxu0 0.0
        %458 = vmatprep.subr.mxu0 0.0
        %459 = vmatpush1.msra.mxu0 0.0
        %460 = vmatprep.subr.mxu0 0.0
        %461 = vmatpush1.msra.mxu0 0.0
        %462 = vmatprep.subr.mxu0 0.0
        %463 = vmatpush1.msra.mxu0 0.0
        %464 = vmatprep.subr.mxu0 0.0
        %465 = vmatpush1.msra.mxu0 0.0
        %466 = vmatprep.subr.mxu0 0.0
        %467 = vmatpush1.msra.mxu0 0.0
        %468 = vmatprep.subr.mxu0 0.0
        %469 = vmatpush1.msra.mxu0 0.0
        %470 = vmatprep.subr.mxu0 0.0
        %471 = vmatpush1.msra.mxu0 0.0
        %472 = vmatprep.subr.mxu0 0.0
        %473 = vmatpush1.msra.mxu0 0.0
        %474 = vmatprep.subr.mxu0 0.0
        %475 = vmatpush1.msra.mxu0 0.0
        %476 = vmatprep.subr.mxu0 0.0
        %477 = vmatpush1.msra.mxu0 0.0
        %478 = vmatprep.subr.mxu0 0.0
        %479 = vmatpush1.msra.mxu0 0.0
        %480 = vmatprep.subr.mxu0 0.0
        %481 = vmatpush1.msra.mxu0 0.0
        %482 = vmatprep.subr.mxu0 0.0
        %483 = vmatpush1.msra.mxu0 0.0
        %484 = vmatprep.subr.mxu0 0.0
        %485 = vmatpush1.msra.mxu0 0.0
        %486 = vmatprep.subr.mxu0 0.0
        %487 = vmatpush1.msra.mxu0 0.0
        %488 = vmatprep.mubr.f32.mxu0 0.0
        %489 = vmatmul.mubr.f32.gmra.mrb[0].mxu0 %v422
        %v490 = vpop.f32.mrb[0].mxu0
        %v491 = vadd.f32 0.0, %v490
        %v492 = vpop.f32.mrb[0].mxu0
        %493 = vdwg.mxu0
        %v494 = vadd.f32 %v421, %v491
        %v495 = vxor.u32 %v494, 2147483648
        %v496 = vmul.f32 %v495, 1.442695
        %v497 = vpow.pop %v496
        %v498 = vadd.f32 %v497, 1.0
        %v499 = vrcp.pop %v498
        %v500 = vmul.f32 1.0, %v499
        %v501 = vtanh.pop %v494
        %v502 = vmul.f32 %v500, %v407
        %504 = vrot.lane.b32.xlu0 %v501, 32
        %v505 = vpop.permute.xlu0 %504
        %v507 = vmul.f32 %v500, %v505
        %509 = vrot.lane.b32.xlu0 %v507, 32
        %v510 = vpop.permute.xlu0 %509
        %v512 = vadd.f32 %v502, %v510
        %v513 = vtanh.pop %v512
        %515 = vrot.lane.b32.xlu0 %v500, 96
        %v516 = vpop.permute.xlu0 %515
        %v518 = vmul.f32 %v513, %v516
        %520 = vrot.lane.b32.xlu0 %v518, 96
        %v521 = vpop.permute.xlu0 %520
        %v523 = vsel %vm311, %v521, 0.0
        %s524 = scalar_lea.vmem %s288, 8 [#allocation10]
        %525 = vst [vmem:[%s524] sm:$0xff] %v523
        %s526 = scalar_lea.vmem %s256, 16 [#allocation4]
        %v527 = vld [vmem:[%s526] sm:$0xff]
        %v528 = vsel %vm311, %v521, 0
        %530 = vmatprep.subr.mxu0 0.0
        %531 = vmatpush1.msra.mxu0 %v304
        %532 = vmatprep.subr.mxu0 0.0
        %533 = vmatpush1.msra.mxu0 %v305
        %534 = vmatprep.subr.mxu0 0.0
        %535 = vmatpush1.msra.mxu0 %v306
        %536 = vmatprep.subr.mxu0 0.0
        %537 = vmatpush1.msra.mxu0 %v307
        %538 = vmatprep.subr.mxu0 0.0
        %539 = vmatpush1.msra.mxu0 0.0
        %540 = vmatprep.subr.mxu0 0.0
        %541 = vmatpush1.msra.mxu0 0.0
        %542 = vmatprep.subr.mxu0 0.0
        %543 = vmatpush1.msra.mxu0 0.0
        %544 = vmatprep.subr.mxu0 0.0
        %545 = vmatpush1.msra.mxu0 0.0
        %546 = vmatprep.subr.mxu0 0.0
        %547 = vmatpush1.msra.mxu0 0.0
        %548 = vmatprep.subr.mxu0 0.0
        %549 = vmatpush1.msra.mxu0 0.0
        %550 = vmatprep.subr.mxu0 0.0
        %551 = vmatpush1.msra.mxu0 0.0
        %552 = vmatprep.subr.mxu0 0.0
        %553 = vmatpush1.msra.mxu0 0.0
        %554 = vmatprep.subr.mxu0 0.0
        %555 = vmatpush1.msra.mxu0 0.0
        %556 = vmatprep.subr.mxu0 0.0
        %557 = vmatpush1.msra.mxu0 0.0
        %558 = vmatprep.subr.mxu0 0.0
        %559 = vmatpush1.msra.mxu0 0.0
        %560 = vmatprep.subr.mxu0 0.0
        %561 = vmatpush1.msra.mxu0 0.0
        %562 = vmatprep.subr.mxu0 0.0
        %563 = vmatpush1.msra.mxu0 0.0
        %564 = vmatprep.subr.mxu0 0.0
        %565 = vmatpush1.msra.mxu0 0.0
        %566 = vmatprep.subr.mxu0 0.0
        %567 = vmatpush1.msra.mxu0 0.0
        %568 = vmatprep.subr.mxu0 0.0
        %569 = vmatpush1.msra.mxu0 0.0
        %570 = vmatprep.subr.mxu0 0.0
        %571 = vmatpush1.msra.mxu0 0.0
        %572 = vmatprep.subr.mxu0 0.0
        %573 = vmatpush1.msra.mxu0 0.0
        %574 = vmatprep.subr.mxu0 0.0
        %575 = vmatpush1.msra.mxu0 0.0
        %576 = vmatprep.subr.mxu0 0.0
        %577 = vmatpush1.msra.mxu0 0.0
        %578 = vmatprep.subr.mxu0 0.0
        %579 = vmatpush1.msra.mxu0 0.0
        %580 = vmatprep.subr.mxu0 0.0
        %581 = vmatpush1.msra.mxu0 0.0
        %582 = vmatprep.subr.mxu0 0.0
        %583 = vmatpush1.msra.mxu0 0.0
        %584 = vmatprep.subr.mxu0 0.0
        %585 = vmatpush1.msra.mxu0 0.0
        %586 = vmatprep.subr.mxu0 0.0
        %587 = vmatpush1.msra.mxu0 0.0
        %588 = vmatprep.subr.mxu0 0.0
        %589 = vmatpush1.msra.mxu0 0.0
        %590 = vmatprep.subr.mxu0 0.0
        %591 = vmatpush1.msra.mxu0 0.0
        %592 = vmatprep.subr.mxu0 0.0
        %593 = vmatpush1.msra.mxu0 0.0
        %594 = vmatprep.mubr.f32.mxu0 0.0
        %595 = vmatmul.mubr.f32.gmra.mrb[0].mxu0 %v528
        %v596 = vpop.f32.mrb[0].mxu0
        %v597 = vadd.f32 0.0, %v596
        %v598 = vpop.f32.mrb[0].mxu0
        %599 = vdwg.mxu0
        %v600 = vadd.f32 %v527, %v597
        %v601 = vxor.u32 %v600, 2147483648
        %v602 = vmul.f32 %v601, 1.442695
        %v603 = vpow.pop %v602
        %v604 = vadd.f32 %v603, 1.0
        %v605 = vrcp.pop %v604
        %v606 = vmul.f32 1.0, %v605
        %v607 = vtanh.pop %v600
        %v608 = vmul.f32 %v606, %v512
        %610 = vrot.lane.b32.xlu0 %v607, 32
        %v611 = vpop.permute.xlu0 %610
        %v613 = vmul.f32 %v606, %v611
        %615 = vrot.lane.b32.xlu0 %v613, 32
        %v616 = vpop.permute.xlu0 %615
        %v618 = vadd.f32 %v608, %v616
        %v619 = vtanh.pop %v618
        %621 = vrot.lane.b32.xlu0 %v606, 96
        %v622 = vpop.permute.xlu0 %621
        %v624 = vmul.f32 %v619, %v622
        %626 = vrot.lane.b32.xlu0 %v624, 96
        %v627 = vpop.permute.xlu0 %626
        %v629 = vsel %vm311, %v627, 0.0
        %s630 = scalar_lea.vmem %s288, 16 [#allocation10]
        %631 = vst [vmem:[%s630] sm:$0xff] %v629
        %s632 = scalar_lea.vmem %s256, 24 [#allocation4]
        %v633 = vld [vmem:[%s632] sm:$0xff]
        %v634 = vsel %vm311, %v627, 0
        %636 = vmatprep.subr.mxu0 0.0
        %637 = vmatpush1.msra.mxu0 %v304
        %638 = vmatprep.subr.mxu0 0.0
        %639 = vmatpush1.msra.mxu0 %v305
        %640 = vmatprep.subr.mxu0 0.0
        %641 = vmatpush1.msra.mxu0 %v306
        %642 = vmatprep.subr.mxu0 0.0
        %643 = vmatpush1.msra.mxu0 %v307
        %644 = vmatprep.subr.mxu0 0.0
        %645 = vmatpush1.msra.mxu0 0.0
        %646 = vmatprep.subr.mxu0 0.0
        %647 = vmatpush1.msra.mxu0 0.0
        %648 = vmatprep.subr.mxu0 0.0
        %649 = vmatpush1.msra.mxu0 0.0
        %650 = vmatprep.subr.mxu0 0.0
        %651 = vmatpush1.msra.mxu0 0.0
        %652 = vmatprep.subr.mxu0 0.0
        %653 = vmatpush1.msra.mxu0 0.0
        %654 = vmatprep.subr.mxu0 0.0
        %655 = vmatpush1.msra.mxu0 0.0
        %656 = vmatprep.subr.mxu0 0.0
        %657 = vmatpush1.msra.mxu0 0.0
        %658 = vmatprep.subr.mxu0 0.0
        %659 = vmatpush1.msra.mxu0 0.0
        %660 = vmatprep.subr.mxu0 0.0
        %661 = vmatpush1.msra.mxu0 0.0
        %662 = vmatprep.subr.mxu0 0.0
        %663 = vmatpush1.msra.mxu0 0.0
        %664 = vmatprep.subr.mxu0 0.0
        %665 = vmatpush1.msra.mxu0 0.0
        %666 = vmatprep.subr.mxu0 0.0
        %667 = vmatpush1.msra.mxu0 0.0
        %668 = vmatprep.subr.mxu0 0.0
        %669 = vmatpush1.msra.mxu0 0.0
        %670 = vmatprep.subr.mxu0 0.0
        %671 = vmatpush1.msra.mxu0 0.0
        %672 = vmatprep.subr.mxu0 0.0
        %673 = vmatpush1.msra.mxu0 0.0
        %674 = vmatprep.subr.mxu0 0.0
        %675 = vmatpush1.msra.mxu0 0.0
        %676 = vmatprep.subr.mxu0 0.0
        %677 = vmatpush1.msra.mxu0 0.0
        %678 = vmatprep.subr.mxu0 0.0
        %679 = vmatpush1.msra.mxu0 0.0
        %680 = vmatprep.subr.mxu0 0.0
        %681 = vmatpush1.msra.mxu0 0.0
        %682 = vmatprep.subr.mxu0 0.0
        %683 = vmatpush1.msra.mxu0 0.0
        %684 = vmatprep.subr.mxu0 0.0
        %685 = vmatpush1.msra.mxu0 0.0
        %686 = vmatprep.subr.mxu0 0.0
        %687 = vmatpush1.msra.mxu0 0.0
        %688 = vmatprep.subr.mxu0 0.0
        %689 = vmatpush1.msra.mxu0 0.0
        %690 = vmatprep.subr.mxu0 0.0
        %691 = vmatpush1.msra.mxu0 0.0
        %692 = vmatprep.subr.mxu0 0.0
        %693 = vmatpush1.msra.mxu0 0.0
        %694 = vmatprep.subr.mxu0 0.0
        %695 = vmatpush1.msra.mxu0 0.0
        %696 = vmatprep.subr.mxu0 0.0
        %697 = vmatpush1.msra.mxu0 0.0
        %698 = vmatprep.subr.mxu0 0.0
        %699 = vmatpush1.msra.mxu0 0.0
        %700 = vmatprep.mubr.f32.mxu0 0.0
        %701 = vmatmul.mubr.f32.gmra.mrb[0].mxu0 %v634
        %v702 = vpop.f32.mrb[0].mxu0
        %v703 = vadd.f32 0.0, %v702
        %v704 = vpop.f32.mrb[0].mxu0
        %705 = vdwg.mxu0
        %v706 = vadd.f32 %v633, %v703
        %v707 = vxor.u32 %v706, 2147483648
        %v708 = vmul.f32 %v707, 1.442695
        %v709 = vpow.pop %v708
        %v710 = vadd.f32 %v709, 1.0
        %v711 = vrcp.pop %v710
        %v712 = vmul.f32 1.0, %v711
        %v713 = vtanh.pop %v706
        %v714 = vmul.f32 %v712, %v618
        %716 = vrot.lane.b32.xlu0 %v713, 32
        %v717 = vpop.permute.xlu0 %716
        %v719 = vmul.f32 %v712, %v717
        %721 = vrot.lane.b32.xlu0 %v719, 32
        %v722 = vpop.permute.xlu0 %721
        %v724 = vadd.f32 %v714, %v722
        %v725 = vtanh.pop %v724
        %727 = vrot.lane.b32.xlu0 %v712, 96
        %v728 = vpop.permute.xlu0 %727
        %v730 = vmul.f32 %v725, %v728
        %732 = vrot.lane.b32.xlu0 %v730, 96
        %v733 = vpop.permute.xlu0 %732
        %v735 = vsel %vm311, %v733, 0.0
        %s736 = scalar_lea.vmem %s288, 24 [#allocation10]
        %737 = vst [vmem:[%s736] sm:$0xff] %v735
        %738 = vst.msk [vmem:[#allocation2] sm:$0xff] %vm311, %v733
        %740 = vrot.lane.b32.xlu0 %v724, 96
        %v741 = vpop.permute.xlu0 %740
        %743 = vst.msk [vmem:[#allocation3] sm:$0xff] %vm311, %v741
        %p744 = scmp.eq.s32.totalorder %s26, 1
        // Predicated region
        $region53: #{tpu_custom_call.1} parent=35 // pred_check
          %p745 = pneg %p744
        $region54: #{tpu_custom_call.1} parent=35 // pred_check_branch
          %747 = sbr.rel (%p745) target = $region56
        $region55: #{tpu_custom_call.1} parent=35 // pred_region
          %748 = vst.msk [vmem:[#allocation11] sm:$0xff] %vm311, %v733
          %749 = vst.msk [vmem:[#allocation13] sm:$0xff] %vm311, %v741
        $region56: #{tpu_custom_call.1} parent=35 // pred_fallthru
          _
        %s750 = sand.u32 %s123, 1
        %s751 = scalar_lea.sflag [#allocation6], %s750
        %s752 = sand.u32 %s123, 1
        %s753 = smul.addr %s752, 32
        %s754 = scalar_lea.vmem [#allocation10], %s753
        // Predicated region
        $region57: #{tpu_custom_call.1} parent=35 // pred_check
          %p755 = pneg %p133
        $region58: #{tpu_custom_call.1} parent=35 // pred_check_branch
          %757 = sbr.rel (%p755) target = $region60
        $region59: #{tpu_custom_call.1} parent=35 // pred_region
          %s758 = smul.u32 4, %s26
          %s760 = ssub.s32 512, 512
          %761 = vsyncadd %s751, %s760
          %s762 = smul.addr %s758, 128
          %s763 = scalar_lea.hbm %s4, %s762
          %s764 = sshll.u32 %s754, 4
          %s765 = int_to_ptr.vmem [resolvable:$true] %s764
          %770 = dma.vmem_to_hbm [thread:$0]  %s765, 512, %s763, %s751, 128, 128, 8
        $region60: #{tpu_custom_call.1} parent=35 // pred_fallthru
          _
        // Predicated region
        $region61: #{tpu_custom_call.1} parent=35 // pred_check
          %p771 = pneg %p154
        $region62: #{tpu_custom_call.1} parent=35 // pred_check_branch
          %773 = sbr.rel (%p771) target = $region64
        $region63: #{tpu_custom_call.1} parent=35 // pred_region
          %s775 = ssub.s32 128, 128
          %776 = vsyncadd [#allocation12], %s775
          %s778 = sshll.u32 [#allocation11], 4
          %s779 = int_to_ptr.vmem [resolvable:$true] %s778
          %781 = dma.vmem_to_hbm [thread:$0]  %s779, 128, %s5, [#allocation12]
        $region64: #{tpu_custom_call.1} parent=35 // pred_fallthru
          _
        // Predicated region
        $region65: #{tpu_custom_call.1} parent=35 // pred_check
          %p782 = pneg %p175
        $region66: #{tpu_custom_call.1} parent=35 // pred_check_branch
          %784 = sbr.rel (%p782) target = $region68
        $region67: #{tpu_custom_call.1} parent=35 // pred_region
          %s786 = ssub.s32 128, 128
          %787 = vsyncadd [#allocation12], %s786
          %s789 = sshll.u32 [#allocation13], 4
          %s790 = int_to_ptr.vmem [resolvable:$true] %s789
          %792 = dma.vmem_to_hbm [thread:$0]  %s790, 128, %s6, [#allocation12]
        $region68: #{tpu_custom_call.1} parent=35 // pred_fallthru
          _
        // Predicated region
        $region69: #{tpu_custom_call.1} parent=35 // pred_check
          %p793 = pneg %p154
        $region70: #{tpu_custom_call.1} parent=35 // pred_check_branch
          %795 = sbr.rel (%p793) target = $region72
        $region71: #{tpu_custom_call.1} parent=35 // pred_region
          %796 = dma.done [#allocation12], 128
        $region72: #{tpu_custom_call.1} parent=35 // pred_fallthru
          _
        // Predicated region
        $region73: #{tpu_custom_call.1} parent=35 // pred_check
          %p797 = pneg %p175
        $region74: #{tpu_custom_call.1} parent=35 // pred_check_branch
          %799 = sbr.rel (%p797) target = $region76
        $region75: #{tpu_custom_call.1} parent=35 // pred_region
          %800 = dma.done [#allocation12], 128
        $region76: #{tpu_custom_call.1} parent=35 // pred_fallthru
          _
      $region36: #{tpu_custom_call.1} parent=5 // pred_fallthru
        _
      %p801 = scmp.le.s32.totalorder 2, %s21
      // Predicated region
      $region77: #{tpu_custom_call.1} parent=5 // pred_check
        %p802 = pneg %p801
      $region78: #{tpu_custom_call.1} parent=5 // pred_check_branch
        %804 = sbr.rel (%p802) target = $region80
      $region79: #{tpu_custom_call.1} parent=5 // pred_region
        %s805 = ssub.s32 %s21, 2
        // Predicated region
        $region81: #{tpu_custom_call.1} parent=79 // pred_check
          %p806 = pneg %p139
        $region82: #{tpu_custom_call.1} parent=79 // pred_check_branch
          %808 = sbr.rel (%p806) target = $region84
        $region83: #{tpu_custom_call.1} parent=79 // pred_region
          %s809 = sand.u32 %s124, 1
          %s810 = scalar_lea.sflag [#allocation6], %s809
          %s811 = sand.u32 %s124, 1
          %s812 = smul.addr %s811, 32
          %s813 = scalar_lea.vmem [#allocation10], %s812
          %814 = dma.done %s810, 512
        $region84: #{tpu_custom_call.1} parent=79 // pred_fallthru
          _
      $region80: #{tpu_custom_call.1} parent=5 // pred_fallthru
        _
    $region6: #{tpu_custom_call.1} parent=1 // loop_footer
      %s25 = sadd.s32 1, %s21
    $region7: #{tpu_custom_call.1} parent=1 // loop_footer_branch
      %20 = sbr.rel target = $region3
    $region8: #{tpu_custom_call.1} parent=1 // loop_exit
      _
    %815 = vsyncpa [#allocation5], 1
    %s816 = scalar_lea.sflag [#allocation5], 1
    %817 = vsyncpa %s816, 1
    %818 = vsyncpa [#allocation8], 1
    %819 = vsyncpa [#allocation6], 1
    %s820 = scalar_lea.sflag [#allocation6], 1
    %821 = vsyncpa %s820, 1
    %822 = vsyncpa [#allocation12], 1

</llo_original>
